<compile_context>
chip_gen: v7x
topology: tpu7x:2x2x1
jax: 0.10.0
libtpu: 0.0.40
codegen_flags: <defaults>
</compile_context>

<pallas_src>
import functools

import jax
import jax.numpy as jnp
from jax.experimental import pallas as pl
from jax.experimental.pallas import tpu as pltpu


def _xeus_embed_kernel(frames_ref, w_ref, b_ref, out_ref, *, frames_per_sample):
    """Fused block kernel: frame encode (MXU) + two-pass stats pooling (VPU).

    frames_ref: (BB*T, F) f32  -- BB batch samples x T frames, row-flattened
    w_ref:      (F, D)    bf16 -- synthetic encoder weight
    b_ref:      (1, D)    f32  -- synthetic encoder bias
    out_ref:    (BB, 2*D) f32  -- [mean | std] pooled embeddings
    """
    T = frames_per_sample
    R = frames_ref.shape[0]
    D = w_ref.shape[1]
    BB = R // T

    # In-kernel f32 -> bf16 cast (VPU op, hidden under the input DMA), then one
    # big (BB*T, F) x (F, D) MXU matmul with f32 accumulation.
    x = frames_ref[...].astype(jnp.bfloat16)
    pre = jnp.dot(x, w_ref[...], preferred_element_type=jnp.float32)
    feats = jnp.tanh(pre + b_ref[...])                      # (BB*T, D) f32

    # Regroup rows per sample.  Free when T % 8 == 0 (f32 sublane tile);
    # otherwise a VMEM relayout copy (still correct).
    feats = feats.reshape(BB, T, D)

    # Exact two-pass statistics over time (torch.std default: unbiased /(T-1)).
    mu = jnp.sum(feats, axis=1) * jnp.float32(1.0 / T)      # (BB, D)
    diff = feats - mu[:, None, :]
    var = jnp.sum(diff * diff, axis=1) * jnp.float32(1.0 / (T - 1))
    std = jnp.sqrt(var)

    # Direct slice stores: 2*D is lane-dense (multiple of 128), no concat /
    # XLU relayout.
    out_ref[:, :D] = mu
    out_ref[:, D:] = std


def xeus_embedder_forward(batch, params, *, frame_size, block_batch=None):
    """Pallas implementation of XeusEmbedder.forward.

    batch: {'data_object': [B, time] f32 waveform, 'lengths': [B] int32}
    Returns {'embeddings': [B, 2*D]} (== cat([mean_t, std_t], dim=1)).
    """
    wave = batch["data_object"]
    _ = batch["lengths"]  # use_mask=False in the reference forward -> unused

    w, b = params["w"], params["b"]                  # (F, D), (1, D)
    B, time = wave.shape
    F, D = w.shape
    assert frame_size == F and time % F == 0
    T = time // F
    assert T >= 2, "unbiased std requires at least 2 frames"

    # Block-batch selection: ~512 matmul rows per grid step (>=256 fills a
    # v6e/v7x MXU pass), but keep >=4 grid steps when the batch allows so both
    # v7x TensorCores get >=2 steps (DMA prefetch overlap).
    if block_batch is None:
        rows_bb = max(1, 512 // T)
        steps_bb = max(1, B // 4)
        block_batch = max(1, min(rows_bb, steps_bb))
    BB = min(block_batch, B)
    if B > 8:
        # Output block rows must satisfy the (8,128) rule (or equal B).
        BB = max(8, (BB // 8) * 8)

    grid = pl.cdiv(B, BB)  # ragged tail handled by masked last-block writes

    # Free metadata reshape: contiguous [B, T*F] -> [B*T, F] row strip.
    frames2d = wave.reshape(B * T, F)
    # Parameters: tiny, reused across all grid steps; cast once here (in a
    # real model the weights would already be stored bf16).
    w_bf16 = w.astype(jnp.bfloat16)
    b_f32 = b.astype(jnp.float32).reshape(1, D)

    # Explicit scoped-VMEM budget derived from the chosen blocks (defaults are
    # 16/32 MiB, well below physical; v7x physical cap is 64 MiB).
    vmem_est = (
        2 * (BB * T) * F * 4        # frames block (f32), double-buffered
        + 2 * F * D * 2             # weight (bf16)
        + 2 * D * 4                 # bias
        + 2 * BB * (2 * D) * 4      # output block, double-buffered
        + 6 * (BB * T) * D * 4      # in-kernel temps (x/pre/feats/diff)
    )
    vmem_limit = int(min(max(2 * vmem_est, 16 * 1024 * 1024), 64 * 1024 * 1024))

    kernel = functools.partial(_xeus_embed_kernel, frames_per_sample=T)

    pooled = pl.pallas_call(
        kernel,
        out_shape=jax.ShapeDtypeStruct((B, 2 * D), jnp.float32),
        grid_spec=pltpu.PrefetchScalarGridSpec(
            num_scalar_prefetch=0,
            grid=(grid,),
            in_specs=[
                pl.BlockSpec((BB * T, F), lambda i: (i, 0)),   # frames strip
                pl.BlockSpec((F, D), lambda i: (0, 0)),        # weight (resident)
                pl.BlockSpec((1, D), lambda i: (0, 0)),        # bias
            ],
            out_specs=pl.BlockSpec((BB, 2 * D), lambda i: (i, 0)),
        ),
        compiler_params=pltpu.CompilerParams(
            dimension_semantics=("parallel",),
            vmem_limit_bytes=vmem_limit,
        ),
    )(frames2d, w_bf16, b_f32)

    return {"embeddings": pooled}


def _reference_forward(batch, params, *, frame_size):
    """Plain-JAX reference (same bf16-operand / f32-accumulate numerics)."""
    wave = batch["data_object"]
    w, b = params["w"], params["b"]
    B, time = wave.shape
    F, D = w.shape
    T = time // F
    frames = wave.reshape(B, T, F).astype(jnp.bfloat16)
    pre = jnp.einsum(
        "btf,fd->btd", frames, w.astype(jnp.bfloat16),
        preferred_element_type=jnp.float32,
    )
    feats = jnp.tanh(pre + b.astype(jnp.float32)[None, :, :])
    mu = feats.mean(axis=1)
    std = jnp.sqrt(((feats - mu[:, None, :]) ** 2).sum(axis=1) / (T - 1))
    return jnp.concatenate([mu, std], axis=1)


if __name__ == "__main__":
    # Shapes implied by forward: raw audio [batch, time], lengths [batch].
    B = 64           # batch; BB=16 -> 4 parallel grid steps, 256 MXU rows/step
    F = 128          # samples per frame (synthetic encoder input dim)
    T = 16           # frames per utterance
    D = 128          # embedding hidden dim -> output is [B, 256]
    TIME = T * F

    key = jax.random.PRNGKey(0)
    k_wave, k_w, k_b = jax.random.split(key, 3)

    wave = jax.random.normal(k_wave, (B, TIME), dtype=jnp.float32)
    lengths = jnp.full((B,), TIME, dtype=jnp.int32)
    params = {
        "w": jax.random.normal(k_w, (F, D), dtype=jnp.float32) / jnp.sqrt(F),
        "b": 0.01 * jax.random.normal(k_b, (1, D), dtype=jnp.float32),
    }

    # Block-divisible batch.
    batch = {"data_object": wave, "lengths": lengths}
    out = xeus_embedder_forward(batch, params, frame_size=F)
    emb = jax.block_until_ready(out["embeddings"])
    ref = _reference_forward(batch, params, frame_size=F)
    assert emb.shape == (B, 2 * D), emb.shape
    assert jnp.allclose(emb, ref, atol=1e-3, rtol=1e-3), "mismatch vs reference"

    # Ragged batch tail (B not a multiple of the block batch): exercised via
    # pl.cdiv grid + masked last-block write-back (no wrapper-side pad copy).
    Br = 44
    batch_r = {"data_object": wave[:Br], "lengths": lengths[:Br]}
    out_r = xeus_embedder_forward(batch_r, params, frame_size=F)
    emb_r = jax.block_until_ready(out_r["embeddings"])
    ref_r = _reference_forward(batch_r, params, frame_size=F)
    assert emb_r.shape == (Br, 2 * D), emb_r.shape
    assert jnp.allclose(emb_r, ref_r, atol=1e-3, rtol=1e-3), "ragged mismatch"

    print("KERNEL_OK")
</pallas_src>

<mosaic_0001>
module attributes {stable_mosaic.version = 11 : i64} {
  func.func @_xeus_embed_kernel(%arg0: i32, %arg1: memref<256x128xf32, #tpu.memory_space<vmem>>, %arg2: memref<128x128xbf16, #tpu.memory_space<vmem>>, %arg3: memref<1x128xf32, #tpu.memory_space<vmem>>, %arg4: memref<16x256xf32, #tpu.memory_space<vmem>>) attributes {dimension_semantics = [#tpu.dimension_semantics<parallel>], iteration_bounds = array<i64: 4>, scalar_prefetch = 0 : i64, scratch_operands = 0 : i64, tpu.core_type = #tpu.core_type<tc>, window_params = [{transform_indices = @transform_0, window_bounds = array<i64: 256, 128>}, {pipeline_mode = #tpu.pipeline_mode<synchronous>, transform_indices = @transform_1, window_bounds = array<i64: 128, 128>}, {pipeline_mode = #tpu.pipeline_mode<synchronous>, transform_indices = @transform_2, window_bounds = array<i64: 1, 128>}, {transform_indices = @transform_3, window_bounds = array<i64: 16, 256>}]} {
    %c0 = arith.constant 0 : index
    %c0_0 = arith.constant 0 : index
    %0 = vector.load %arg1[%c0, %c0_0] : memref<256x128xf32, #tpu.memory_space<vmem>>, vector<256x128xf32>
    %1 = arith.truncf %0 : vector<256x128xf32> to vector<256x128xbf16>
    %c0_1 = arith.constant 0 : index
    %c0_2 = arith.constant 0 : index
    %2 = vector.load %arg2[%c0_1, %c0_2] : memref<128x128xbf16, #tpu.memory_space<vmem>>, vector<128x128xbf16>
    %cst = arith.constant dense<0.000000e+00> : vector<256x128xf32>
    %3 = tpu.matmul %1, %2, %cst {dimension_numbers = #tpu.dot_dimension_numbers<[1], [0], [0], [1], [0, 0, 1, 1], [], []>} : vector<256x128xbf16>, vector<128x128xbf16>, vector<256x128xf32> -> vector<256x128xf32>
    %c0_3 = arith.constant 0 : index
    %c0_4 = arith.constant 0 : index
    %4 = vector.load %arg3[%c0_3, %c0_4] : memref<1x128xf32, #tpu.memory_space<vmem>>, vector<1x128xf32>
    %5 = vector.broadcast %4 : vector<1x128xf32> to vector<256x128xf32>
    %6 = arith.addf %3, %5 : vector<256x128xf32>
    %7 = math.tanh %6 : vector<256x128xf32>
    %8 = vector.shape_cast %7 : vector<256x128xf32> to vector<16x16x128xf32>
    %cst_5 = arith.constant dense<0.000000e+00> : vector<16x128xf32>
    %9 = vector.multi_reduction <add>, %8, %cst_5 [1] : vector<16x16x128xf32> to vector<16x128xf32>
    %cst_6 = arith.constant 6.250000e-02 : f32
    %10 = vector.broadcast %cst_6 : f32 to vector<16x128xf32>
    %11 = arith.mulf %9, %10 : vector<16x128xf32>
    %12 = vector.shape_cast %11 : vector<16x128xf32> to vector<16x1x128xf32>
    %13 = vector.broadcast %12 : vector<16x1x128xf32> to vector<16x16x128xf32>
    %14 = arith.subf %8, %13 : vector<16x16x128xf32>
    %15 = arith.mulf %14, %14 : vector<16x16x128xf32>
    %cst_7 = arith.constant dense<0.000000e+00> : vector<16x128xf32>
    %16 = vector.multi_reduction <add>, %15, %cst_7 [1] : vector<16x16x128xf32> to vector<16x128xf32>
    %cst_8 = arith.constant 0.0666666701 : f32
    %17 = vector.broadcast %cst_8 : f32 to vector<16x128xf32>
    %18 = arith.mulf %16, %17 : vector<16x128xf32>
    %19 = math.sqrt %18 : vector<16x128xf32>
    %c0_9 = arith.constant 0 : index
    %c0_10 = arith.constant 0 : index
    %20 = vector.load %arg4[%c0_9, %c0_10] : memref<16x256xf32, #tpu.memory_space<vmem>>, vector<16x128xf32>
    tpu.vector_store %arg4[%c0_9, %c0_10], %11 {strides = array<i32>} : memref<16x256xf32, #tpu.memory_space<vmem>>, vector<16x128xf32>,
    %c0_11 = arith.constant 0 : index
    %c128 = arith.constant 128 : index
    %21 = vector.load %arg4[%c0_11, %c128] : memref<16x256xf32, #tpu.memory_space<vmem>>, vector<16x128xf32>
    tpu.vector_store %arg4[%c0_11, %c128], %19 {strides = array<i32>} : memref<16x256xf32, #tpu.memory_space<vmem>>, vector<16x128xf32>,
    return
  }
  func.func @transform_0(%arg0: i32) -> (i32, i32) {
    %c0_i32 = arith.constant 0 : i32
    %c0_i32_0 = arith.constant 0 : i32
    return %arg0, %c0_i32 : i32, i32
  }
  func.func @transform_1(%arg0: i32) -> (i32, i32) {
    %c0_i32 = arith.constant 0 : i32
    %c0_i32_0 = arith.constant 0 : i32
    %c0_i32_1 = arith.constant 0 : i32
    return %c0_i32, %c0_i32_0 : i32, i32
  }
  func.func @transform_2(%arg0: i32) -> (i32, i32) {
    %c0_i32 = arith.constant 0 : i32
    %c0_i32_0 = arith.constant 0 : i32
    %c0_i32_1 = arith.constant 0 : i32
    return %c0_i32, %c0_i32_0 : i32, i32
  }
  func.func @transform_3(%arg0: i32) -> (i32, i32) {
    %c0_i32 = arith.constant 0 : i32
    %c0_i32_0 = arith.constant 0 : i32
    return %arg0, %c0_i32 : i32, i32
  }
}

</mosaic_0001>

<llo_original>
// kernel: tpu_custom_call.1
$region0: #{tpu_custom_call.1}
  #allocation0 [shape = 'u32[]', space=smem, size = 0x4, offset = 0x4, fixed_abs, tag = 'smem constant byte address 0x4 - core index']
  #allocation1 [shape = 'u32[144,128]{1,0:T(1,128)}', space=vmem, size = 0x12000, scoped, tag = 'internal scratch']
  %s0 = inlined_call_operand.hbm [shape: f32[1024,128], index: 0, kind: input, shape index: {}]
  %s1 = inlined_call_operand.hbm [shape: bf16[128,128], index: 1, kind: input, shape index: {}]
  %s2 = inlined_call_operand.vmem [shape: f32[1,128], index: 2, kind: input, shape index: {}]
  %s3 = inlined_call_operand.hbm [shape: f32[64,256], index: 3, kind: output, shape index: {}]
  %s4 = sld [smem:[#allocation0]]
  $region53: #{tpu_custom_call.1} parent=0
    _
  %s6 = ssub.s32 1, %s4
  %s7 = scalar_select 0, %s6, %s4
  $region1: #{tpu_custom_call.1} parent=0
    #allocation2 [shape = 'u8[262144]{0}', space=vmem, size = 0x40000, scoped, tag = 'input window, operand 0']
    #allocation3 [shape = 's32[2]{0}', space=sflag, size = 0x8, scoped, tag = 'scoped memory for tpu_custom_call.1']
    #allocation4 [shape = 's32[2]{0}', space=sflag, size = 0x8, scoped, tag = 'scoped memory for tpu_custom_call.1']
    #allocation5 [shape = 'u8[32768]{0}', space=vmem, size = 0x8000, scoped, tag = 'input window, operand 1, single buffered']
    #allocation6 [shape = 's32[1]{0}', space=sflag, size = 0x4, scoped, tag = 'scoped memory for tpu_custom_call.1']
    #allocation7 [shape = 'u8[32768]{0}', space=vmem, size = 0x8000, scoped, tag = 'output window, operand 0']
    %8 = vsyncpa [#allocation3], 0
    %s9 = scalar_lea.sflag [#allocation3], 1
    %10 = vsyncpa %s9, 0
    %11 = vsyncpa [#allocation6], 0
    %12 = vsyncpa [#allocation4], 0
    %s13 = scalar_lea.sflag [#allocation4], 1
    %14 = vsyncpa %s13, 0
    loop: start=0, step=1, limit=6
    $region2: #{tpu_custom_call.1} parent=1 // loop_pre_header
      _
    $region3: #{tpu_custom_call.1} parent=1 // loop_header
      %s16 = sphi 0, %s20
      %p17 = scmp.ge.s32.totalorder %s16, 6
      %s26 = sphi 0, %s28
      %s29 = sphi 0, %s26
      %s30 = sphi 0, %s29
      %s46 = sphi 0, %s30
      %s50 = sphi 0, %s50
      %s52 = sphi 0, %s50
      %s53 = sphi 0, %s52
      %s67 = sphi 0, %s53
      %s71 = sphi 0, %s71
      %s73 = sphi 0, %s71
      %s74 = sphi 0, %s73
      %s88 = sphi 0, %s74
      %s94 = sphi 0, %s96
      %s97 = sphi 0, %s94
      %s98 = sphi 0, %s97
      %s114 = sphi 0, %s98
    $region4: #{tpu_custom_call.1} parent=1 // loop_header_branch
      %19 = sbr.rel (%p17) target = $region8
    $region5: #{tpu_custom_call.1} parent=1 // loop_body
      %s21 = ssub.s32 %s16, 1
      %s22 = ssub.s32 %s16, 2
      %s23 = sadd.s32 %s16, 1
      %s24 = ssub.s32 %s16, %s23
      %p25 = scmp.eq.s32.totalorder %s24, 0
      %s27 = sadd.s32 %s26, 1
      %s28 = scalar_select %p25, %s26, %s27
      %p31 = pneg %p25
      %p32 = scmp.eq.s32.totalorder %s16, 3
      %p33 = por %p31, %p32
      %p34 = scmp.ne.s32.totalorder %s26, %s29
      %p35 = scmp.eq.s32.totalorder %s16, 0
      %p36 = por %p34, %p35
      %p37 = scmp.ne.s32.totalorder %s26, %s29
      %p38 = scmp.eq.s32.totalorder %s21, 3
      %p39 = por %p37, %p38
      %p40 = scmp.ne.s32.totalorder %s29, %s30
      %p41 = scmp.eq.s32.totalorder %s21, 0
      %p42 = por %p40, %p41
      %p43 = scmp.ne.s32.totalorder %s29, %s30
      %p44 = scmp.eq.s32.totalorder %s22, 3
      %p45 = por %p43, %p44
      %p47 = scmp.ne.s32.totalorder %s30, %s46
      %p48 = scmp.eq.s32.totalorder %s22, 0
      %p49 = por %p47, %p48
      %s51 = sadd.s32 %s50, 1
      %p54 = scmp.eq.s32.totalorder %s16, 3
      %p55 = scmp.ne.s32.totalorder %s50, %s52
      %p56 = scmp.eq.s32.totalorder %s16, 0
      %p57 = por %p55, %p56
      %p58 = scmp.ne.s32.totalorder %s50, %s52
      %p59 = scmp.eq.s32.totalorder %s21, 3
      %p60 = por %p58, %p59
      %p61 = scmp.ne.s32.totalorder %s52, %s53
      %p62 = scmp.eq.s32.totalorder %s21, 0
      %p63 = por %p61, %p62
      %p64 = scmp.ne.s32.totalorder %s52, %s53
      %p65 = scmp.eq.s32.totalorder %s22, 3
      %p66 = por %p64, %p65
      %p68 = scmp.ne.s32.totalorder %s53, %s67
      %p69 = scmp.eq.s32.totalorder %s22, 0
      %p70 = por %p68, %p69
      %s72 = sadd.s32 %s71, 1
      %p75 = scmp.eq.s32.totalorder %s16, 3
      %p76 = scmp.ne.s32.totalorder %s71, %s73
      %p77 = scmp.eq.s32.totalorder %s16, 0
      %p78 = por %p76, %p77
      %p79 = scmp.ne.s32.totalorder %s71, %s73
      %p80 = scmp.eq.s32.totalorder %s21, 3
      %p81 = por %p79, %p80
      %p82 = scmp.ne.s32.totalorder %s73, %s74
      %p83 = scmp.eq.s32.totalorder %s21, 0
      %p84 = por %p82, %p83
      %p85 = scmp.ne.s32.totalorder %s73, %s74
      %p86 = scmp.eq.s32.totalorder %s22, 3
      %p87 = por %p85, %p86
      %p89 = scmp.ne.s32.totalorder %s74, %s88
      %p90 = scmp.eq.s32.totalorder %s22, 0
      %p91 = por %p89, %p90
      %s92 = ssub.s32 %s16, %s23
      %p93 = scmp.eq.s32.totalorder %s92, 0
      %s95 = sadd.s32 %s94, 1
      %s96 = scalar_select %p93, %s94, %s95
      %p99 = pneg %p93
      %p100 = scmp.eq.s32.totalorder %s16, 3
      %p101 = por %p99, %p100
      %p102 = scmp.ne.s32.totalorder %s94, %s97
      %p103 = scmp.eq.s32.totalorder %s16, 0
      %p104 = por %p102, %p103
      %p105 = scmp.ne.s32.totalorder %s94, %s97
      %p106 = scmp.eq.s32.totalorder %s21, 3
      %p107 = por %p105, %p106
      %p108 = scmp.ne.s32.totalorder %s97, %s98
      %p109 = scmp.eq.s32.totalorder %s21, 0
      %p110 = por %p108, %p109
      %p111 = scmp.ne.s32.totalorder %s97, %s98
      %p112 = scmp.eq.s32.totalorder %s22, 3
      %p113 = por %p111, %p112
      %p115 = scmp.ne.s32.totalorder %s98, %s114
      %p116 = scmp.eq.s32.totalorder %s22, 0
      %p117 = por %p115, %p116
      %p118 = scmp.le.s32.totalorder 1, %s16
      %p119 = scmp.lt.s32.totalorder %s16, 5
      %p120 = pnand %p118, %p119
      %p121 = pneg %p120
      // Predicated region
      $region9: #{tpu_custom_call.1} parent=5 // pred_check
        _
      $region10: #{tpu_custom_call.1} parent=5 // pred_check_branch
        %123 = sbr.rel (%p120) target = $region12
      $region11: #{tpu_custom_call.1} parent=5 // pred_region
        %s124 = ssub.s32 %s16, 1
        // Predicated region
        $region13: #{tpu_custom_call.1} parent=11 // pred_check
          %p125 = pneg %p63
        $region14: #{tpu_custom_call.1} parent=11 // pred_check_branch
          %127 = sbr.rel (%p125) target = $region16
        $region15: #{tpu_custom_call.1} parent=11 // pred_region
          %s129 = ssub.s32 1024, 1024
          %130 = vsyncadd [#allocation6], %s129
          %s131 = sshll.u32 [#allocation5], 4
          %s132 = int_to_ptr.vmem [resolvable:$true] %s131
          %137 = dma.hbm_to_vmem [thread:$0]  %s1, 1024, %s132, [#allocation6], 64, 64, 4
        $region16: #{tpu_custom_call.1} parent=11 // pred_fallthru
          _
        // Predicated region
        $region17: #{tpu_custom_call.1} parent=11 // pred_check
          %p138 = pneg %p84
        $region18: #{tpu_custom_call.1} parent=11 // pred_check_branch
          %140 = sbr.rel (%p138) target = $region20
        $region19: #{tpu_custom_call.1} parent=11 // pred_region
          _
        $region20: #{tpu_custom_call.1} parent=11 // pred_fallthru
          _
      $region12: #{tpu_custom_call.1} parent=5 // pred_fallthru
        _
      %p141 = scmp.lt.s32.totalorder %s16, 4
      // Predicated region
      $region21: #{tpu_custom_call.1} parent=5 // pred_check
        %p142 = pneg %p141
      $region22: #{tpu_custom_call.1} parent=5 // pred_check_branch
        %144 = sbr.rel (%p142) target = $region24
      $region23: #{tpu_custom_call.1} parent=5 // pred_region
        // Predicated region
        $region25: #{tpu_custom_call.1} parent=23 // pred_check
          %p145 = pneg %p36
        $region26: #{tpu_custom_call.1} parent=23 // pred_check_branch
          %147 = sbr.rel (%p145) target = $region28
        $region27: #{tpu_custom_call.1} parent=23 // pred_region
          %s148 = sand.u32 %s26, 1
          %s149 = scalar_lea.sflag [#allocation3], %s148
          %s150 = sand.u32 %s26, 1
          %s151 = smul.addr %s150, 256
          %s152 = scalar_lea.vmem [#allocation2], %s151
          %s153 = smul.u32 32, %s16
          %s155 = ssub.s32 4096, 4096
          %156 = vsyncadd %s149, %s155
          %s157 = smul.addr %s153, 128
          %s158 = scalar_lea.hbm %s0, %s157
          %s159 = sshll.u32 %s152, 4
          %s160 = int_to_ptr.vmem [resolvable:$true] %s159
          %165 = dma.hbm_to_vmem [thread:$0]  %s158, 4096, %s160, %s149, 128, 128, 8
        $region28: #{tpu_custom_call.1} parent=23 // pred_fallthru
          _
      $region24: #{tpu_custom_call.1} parent=5 // pred_fallthru
        _
      %p166 = scmp.le.s32.totalorder 1, %s16
      %p167 = scmp.lt.s32.totalorder %s16, 5
      %p168 = pnand %p166, %p167
      %p169 = pneg %p168
      // Predicated region
      $region29: #{tpu_custom_call.1} parent=5 // pred_check
        _
      $region30: #{tpu_custom_call.1} parent=5 // pred_check_branch
        %171 = sbr.rel (%p168) target = $region32
      $region31: #{tpu_custom_call.1} parent=5 // pred_region
        %s172 = ssub.s32 %s16, 1
        %s173 = sand.u32 %s29, 1
        %s174 = scalar_lea.sflag [#allocation3], %s173
        %s175 = sand.u32 %s29, 1
        %s176 = smul.addr %s175, 256
        %s177 = scalar_lea.vmem [#allocation2], %s176
        // Predicated region
        $region33: #{tpu_custom_call.1} parent=31 // pred_check
          %p178 = pneg %p42
        $region34: #{tpu_custom_call.1} parent=31 // pred_check_branch
          %180 = sbr.rel (%p178) target = $region36
        $region35: #{tpu_custom_call.1} parent=31 // pred_region
          %181 = dma.done %s174, 4096
        $region36: #{tpu_custom_call.1} parent=31 // pred_fallthru
          _
        // Predicated region
        $region37: #{tpu_custom_call.1} parent=31 // pred_check
          %p182 = pneg %p63
        $region38: #{tpu_custom_call.1} parent=31 // pred_check_branch
          %184 = sbr.rel (%p182) target = $region40
        $region39: #{tpu_custom_call.1} parent=31 // pred_region
          %185 = dma.done [#allocation6], 1024
        $region40: #{tpu_custom_call.1} parent=31 // pred_fallthru
          _
        %s186 = sand.u32 %s29, 1
        %s187 = scalar_lea.sflag [#allocation3], %s186
        %s188 = sand.u32 %s29, 1
        %s189 = smul.addr %s188, 256
        %s190 = scalar_lea.vmem [#allocation2], %s189
        %p191 = pneg %p42
        %p192 = pneg %p39
        %p193 = pneg %p63
        %p194 = pneg %p60
        %p195 = pneg %p84
        %p196 = pneg %p81
        %p197 = pneg %p110
        %p198 = pneg %p107
        %s199 = sand.u32 %s97, 1
        %s200 = scalar_lea.sflag [#allocation4], %s199
        %s201 = sand.u32 %s97, 1
        %s202 = smul.addr %s201, 32
        %s203 = scalar_lea.vmem [#allocation7], %s202
        %s204 = smul.u32 32, %s21
        %s205 = smul.u32 2, %s21
        %v207 = vld [vmem:[%s177] sm:$0xff]
        %v208 = vld [vmem:[%s177 + $0x8] sm:$0xff]
        %v209 = vld [vmem:[%s177 + $0x10] sm:$0xff]
        %v210 = vld [vmem:[%s177 + $0x18] sm:$0xff]
        %v211 = vld [vmem:[%s177 + $0x20] sm:$0xff]
        %v212 = vld [vmem:[%s177 + $0x28] sm:$0xff]
        %v213 = vld [vmem:[%s177 + $0x30] sm:$0xff]
        %v214 = vld [vmem:[%s177 + $0x38] sm:$0xff]
        %v215 = vld [vmem:[%s177 + $0x40] sm:$0xff]
        %v216 = vld [vmem:[%s177 + $0x48] sm:$0xff]
        %v217 = vld [vmem:[%s177 + $0x50] sm:$0xff]
        %v218 = vld [vmem:[%s177 + $0x58] sm:$0xff]
        %v219 = vld [vmem:[%s177 + $0x60] sm:$0xff]
        %v220 = vld [vmem:[%s177 + $0x68] sm:$0xff]
        %v221 = vld [vmem:[%s177 + $0x70] sm:$0xff]
        %v222 = vld [vmem:[%s177 + $0x78] sm:$0xff]
        %v223 = vld [vmem:[%s177 + $0x80] sm:$0xff]
        %v224 = vld [vmem:[%s177 + $0x88] sm:$0xff]
        %v225 = vld [vmem:[%s177 + $0x90] sm:$0xff]
        %v226 = vld [vmem:[%s177 + $0x98] sm:$0xff]
        %v227 = vld [vmem:[%s177 + $0xa0] sm:$0xff]
        %v228 = vld [vmem:[%s177 + $0xa8] sm:$0xff]
        %v229 = vld [vmem:[%s177 + $0xb0] sm:$0xff]
        %v230 = vld [vmem:[%s177 + $0xb8] sm:$0xff]
        %v231 = vld [vmem:[%s177 + $0xc0] sm:$0xff]
        %v232 = vld [vmem:[%s177 + $0xc8] sm:$0xff]
        %v233 = vld [vmem:[%s177 + $0xd0] sm:$0xff]
        %v234 = vld [vmem:[%s177 + $0xd8] sm:$0xff]
        %v235 = vld [vmem:[%s177 + $0xe0] sm:$0xff]
        %v236 = vld [vmem:[%s177 + $0xe8] sm:$0xff]
        %v237 = vld [vmem:[%s177 + $0xf0] sm:$0xff]
        %v238 = vld [vmem:[%s177 + $0xf8] sm:$0xff]
        %v239 = vpack.c.bf16 %v208, %v207
        %v240 = vpack.c.bf16 %v210, %v209
        %v241 = vpack.c.bf16 %v212, %v211
        %v242 = vpack.c.bf16 %v214, %v213
        %v243 = vpack.c.bf16 %v216, %v215
        %v244 = vpack.c.bf16 %v218, %v217
        %v245 = vpack.c.bf16 %v220, %v219
        %v246 = vpack.c.bf16 %v222, %v221
        %v247 = vpack.c.bf16 %v224, %v223
        %v248 = vpack.c.bf16 %v226, %v225
        %v249 = vpack.c.bf16 %v228, %v227
        %v250 = vpack.c.bf16 %v230, %v229
        %v251 = vpack.c.bf16 %v232, %v231
        %v252 = vpack.c.bf16 %v234, %v233
        %v253 = vpack.c.bf16 %v236, %v235
        %v254 = vpack.c.bf16 %v238, %v237
        %v255 = vld [vmem:[#allocation5] sm:$0xf]
        %v256 = vld [vmem:[#allocation5 + $0x4] sm:$0xf]
        %v257 = vld [vmem:[#allocation5 + $0x8] sm:$0xf]
        %v258 = vld [vmem:[#allocation5 + $0xc] sm:$0xf]
        %v259 = vld [vmem:[#allocation5 + $0x10] sm:$0xf]
        %v260 = vld [vmem:[#allocation5 + $0x14] sm:$0xf]
        %v261 = vld [vmem:[#allocation5 + $0x18] sm:$0xf]
        %v262 = vld [vmem:[#allocation5 + $0x1c] sm:$0xf]
        %v263 = vld [vmem:[#allocation5 + $0x20] sm:$0xf]
        %v264 = vld [vmem:[#allocation5 + $0x24] sm:$0xf]
        %v265 = vld [vmem:[#allocation5 + $0x28] sm:$0xf]
        %v266 = vld [vmem:[#allocation5 + $0x2c] sm:$0xf]
        %v267 = vld [vmem:[#allocation5 + $0x30] sm:$0xf]
        %v268 = vld [vmem:[#allocation5 + $0x34] sm:$0xf]
        %v269 = vld [vmem:[#allocation5 + $0x38] sm:$0xf]
        %v270 = vld [vmem:[#allocation5 + $0x3c] sm:$0xf]
        %v271 = vld [vmem:[%s2] sm:$0x1]
        %v273 = vlaneseq
        %v274 = vshrl.u32 %v273, 7
        %v275 = vsub.s32 0, %v274
        %v276 = vrot.slane %v271, %v275
        %v294 = vunpack.c.l.b16 %v255
        %v295 = vunpack.c.l.b16 %v256
        %v296 = vunpack.c.l.b16 %v257
        %v297 = vunpack.c.l.b16 %v258
        %v298 = vunpack.c.l.b16 %v259
        %v299 = vunpack.c.l.b16 %v260
        %v300 = vunpack.c.l.b16 %v261
        %v301 = vunpack.c.l.b16 %v262
        %v302 = vunpack.c.l.b16 %v263
        %v303 = vunpack.c.l.b16 %v264
        %v304 = vunpack.c.l.b16 %v265
        %v305 = vunpack.c.l.b16 %v266
        %v306 = vunpack.c.l.b16 %v267
        %v307 = vunpack.c.l.b16 %v268
        %v308 = vunpack.c.l.b16 %v269
        %v309 = vunpack.c.l.b16 %v270
        %v310 = vpack.c.b16 %v295, %v294
        %v311 = vpack.c.b16 %v297, %v296
        %v312 = vpack.c.b16 %v299, %v298
        %v313 = vpack.c.b16 %v301, %v300
        %v314 = vpack.c.b16 %v303, %v302
        %v315 = vpack.c.b16 %v305, %v304
        %v316 = vpack.c.b16 %v307, %v306
        %v317 = vpack.c.b16 %v309, %v308
        %326 = vmatprep.subr.bf16.mxu0 0
        %327 = vmatpush1.bf16.msra.mxu0 %v310
        %328 = vmatprep.subr.bf16.mxu0 0
        %329 = vmatpush1.bf16.msra.mxu0 %v311
        %330 = vmatprep.subr.bf16.mxu0 0
        %331 = vmatpush1.bf16.msra.mxu0 %v312
        %332 = vmatprep.subr.bf16.mxu0 0
        %333 = vmatpush1.bf16.msra.mxu0 %v313
        %334 = vmatprep.subr.bf16.mxu0 0
        %335 = vmatpush1.bf16.msra.mxu0 %v314
        %336 = vmatprep.subr.bf16.mxu0 0
        %337 = vmatpush1.bf16.msra.mxu0 %v315
        %338 = vmatprep.subr.bf16.mxu0 0
        %339 = vmatpush1.bf16.msra.mxu0 %v316
        %340 = vmatprep.subr.bf16.mxu0 0
        %341 = vmatpush1.bf16.msra.mxu0 %v317
        %342 = vmatprep.subr.bf16.mxu0 0
        %343 = vmatpush1.bf16.msra.mxu0 0
        %344 = vmatprep.subr.bf16.mxu0 0
        %345 = vmatpush1.bf16.msra.mxu0 0
        %346 = vmatprep.subr.bf16.mxu0 0
        %347 = vmatpush1.bf16.msra.mxu0 0
        %348 = vmatprep.subr.bf16.mxu0 0
        %349 = vmatpush1.bf16.msra.mxu0 0
        %350 = vmatprep.subr.bf16.mxu0 0
        %351 = vmatpush1.bf16.msra.mxu0 0
        %352 = vmatprep.subr.bf16.mxu0 0
        %353 = vmatpush1.bf16.msra.mxu0 0
        %354 = vmatprep.subr.bf16.mxu0 0
        %355 = vmatpush1.bf16.msra.mxu0 0
        %356 = vmatprep.subr.bf16.mxu0 0
        %357 = vmatpush1.bf16.msra.mxu0 0
        %358 = vmatprep.mubr.bf16.mxu0 0
        %359 = vmatmul.mubr.bf16.gmra.mrb[0].mxu0 %v239
        %v360 = vpop.f32.mrb[0].mxu0
        %v361 = vadd.f32 %v276, %v360
        %v362 = vpop.f32.mrb[0].mxu0
        %v363 = vpop.f32.mrb[0].mxu0
        %v364 = vadd.f32 %v276, %v363
        %v365 = vpop.f32.mrb[0].mxu0
        %366 = vmatprep.mubr.bf16.mxu0 0
        %367 = vmatmul.mubr.bf16.gmra.mrb[0].mxu0 %v240
        %v368 = vpop.f32.mrb[0].mxu0
        %v369 = vadd.f32 %v276, %v368
        %v370 = vpop.f32.mrb[0].mxu0
        %v371 = vpop.f32.mrb[0].mxu0
        %v372 = vadd.f32 %v276, %v371
        %v373 = vpop.f32.mrb[0].mxu0
        %374 = vmatprep.mubr.bf16.mxu0 0
        %375 = vmatmul.mubr.bf16.gmra.mrb[0].mxu0 %v241
        %v376 = vpop.f32.mrb[0].mxu0
        %v377 = vadd.f32 %v276, %v376
        %v378 = vpop.f32.mrb[0].mxu0
        %v379 = vpop.f32.mrb[0].mxu0
        %v380 = vadd.f32 %v276, %v379
        %v381 = vpop.f32.mrb[0].mxu0
        %382 = vmatprep.mubr.bf16.mxu0 0
        %383 = vmatmul.mubr.bf16.gmra.mrb[0].mxu0 %v242
        %v384 = vpop.f32.mrb[0].mxu0
        %v385 = vadd.f32 %v276, %v384
        %v386 = vpop.f32.mrb[0].mxu0
        %v387 = vpop.f32.mrb[0].mxu0
        %v388 = vadd.f32 %v276, %v387
        %v389 = vpop.f32.mrb[0].mxu0
        %390 = vmatprep.mubr.bf16.mxu0 0
        %391 = vmatmul.mubr.bf16.gmra.mrb[0].mxu0 %v243
        %v392 = vpop.f32.mrb[0].mxu0
        %v393 = vadd.f32 %v276, %v392
        %v394 = vpop.f32.mrb[0].mxu0
        %v395 = vpop.f32.mrb[0].mxu0
        %v396 = vadd.f32 %v276, %v395
        %v397 = vpop.f32.mrb[0].mxu0
        %398 = vmatprep.mubr.bf16.mxu0 0
        %399 = vmatmul.mubr.bf16.gmra.mrb[0].mxu0 %v244
        %v400 = vpop.f32.mrb[0].mxu0
        %v401 = vadd.f32 %v276, %v400
        %v402 = vpop.f32.mrb[0].mxu0
        %v403 = vpop.f32.mrb[0].mxu0
        %v404 = vadd.f32 %v276, %v403
        %v405 = vpop.f32.mrb[0].mxu0
        %406 = vmatprep.mubr.bf16.mxu0 0
        %407 = vmatmul.mubr.bf16.gmra.mrb[0].mxu0 %v245
        %v408 = vpop.f32.mrb[0].mxu0
        %v409 = vadd.f32 %v276, %v408
        %v410 = vpop.f32.mrb[0].mxu0
        %v411 = vpop.f32.mrb[0].mxu0
        %v412 = vadd.f32 %v276, %v411
        %v413 = vpop.f32.mrb[0].mxu0
        %414 = vmatprep.mubr.bf16.mxu0 0
        %415 = vmatmul.mubr.bf16.gmra.mrb[0].mxu0 %v246
        %v416 = vpop.f32.mrb[0].mxu0
        %v417 = vadd.f32 %v276, %v416
        %v418 = vpop.f32.mrb[0].mxu0
        %v419 = vpop.f32.mrb[0].mxu0
        %v420 = vadd.f32 %v276, %v419
        %v421 = vpop.f32.mrb[0].mxu0
        %422 = vmatprep.mubr.bf16.mxu0 0
        %423 = vmatmul.mubr.bf16.gmra.mrb[0].mxu0 %v247
        %v424 = vpop.f32.mrb[0].mxu0
        %v425 = vadd.f32 %v276, %v424
        %v426 = vpop.f32.mrb[0].mxu0
        %v427 = vpop.f32.mrb[0].mxu0
        %v428 = vadd.f32 %v276, %v427
        %v429 = vpop.f32.mrb[0].mxu0
        %430 = vmatprep.mubr.bf16.mxu0 0
        %431 = vmatmul.mubr.bf16.gmra.mrb[0].mxu0 %v248
        %v432 = vpop.f32.mrb[0].mxu0
        %v433 = vadd.f32 %v276, %v432
        %v434 = vpop.f32.mrb[0].mxu0
        %v435 = vpop.f32.mrb[0].mxu0
        %v436 = vadd.f32 %v276, %v435
        %v437 = vpop.f32.mrb[0].mxu0
        %438 = vmatprep.mubr.bf16.mxu0 0
        %439 = vmatmul.mubr.bf16.gmra.mrb[0].mxu0 %v249
        %v440 = vpop.f32.mrb[0].mxu0
        %v441 = vadd.f32 %v276, %v440
        %v442 = vpop.f32.mrb[0].mxu0
        %v443 = vpop.f32.mrb[0].mxu0
        %v444 = vadd.f32 %v276, %v443
        %v445 = vpop.f32.mrb[0].mxu0
        %446 = vmatprep.mubr.bf16.mxu0 0
        %447 = vmatmul.mubr.bf16.gmra.mrb[0].mxu0 %v250
        %v448 = vpop.f32.mrb[0].mxu0
        %v449 = vadd.f32 %v276, %v448
        %v450 = vpop.f32.mrb[0].mxu0
        %v451 = vpop.f32.mrb[0].mxu0
        %v452 = vadd.f32 %v276, %v451
        %v453 = vpop.f32.mrb[0].mxu0
        %454 = vmatprep.mubr.bf16.mxu0 0
        %455 = vmatmul.mubr.bf16.gmra.mrb[0].mxu0 %v251
        %v456 = vpop.f32.mrb[0].mxu0
        %v457 = vadd.f32 %v276, %v456
        %v458 = vpop.f32.mrb[0].mxu0
        %v459 = vpop.f32.mrb[0].mxu0
        %v460 = vadd.f32 %v276, %v459
        %v461 = vpop.f32.mrb[0].mxu0
        %462 = vmatprep.mubr.bf16.mxu0 0
        %463 = vmatmul.mubr.bf16.gmra.mrb[0].mxu0 %v252
        %v464 = vpop.f32.mrb[0].mxu0
        %v465 = vadd.f32 %v276, %v464
        %v466 = vpop.f32.mrb[0].mxu0
        %v467 = vpop.f32.mrb[0].mxu0
        %v468 = vadd.f32 %v276, %v467
        %v469 = vpop.f32.mrb[0].mxu0
        %470 = vmatprep.mubr.bf16.mxu0 0
        %471 = vmatmul.mubr.bf16.gmra.mrb[0].mxu0 %v253
        %v472 = vpop.f32.mrb[0].mxu0
        %v473 = vadd.f32 %v276, %v472
        %v474 = vpop.f32.mrb[0].mxu0
        %v475 = vpop.f32.mrb[0].mxu0
        %v476 = vadd.f32 %v276, %v475
        %v477 = vpop.f32.mrb[0].mxu0
        %478 = vmatprep.mubr.bf16.mxu0 0
        %479 = vmatmul.mubr.bf16.gmra.mrb[0].mxu0 %v254
        %v480 = vpop.f32.mrb[0].mxu0
        %v481 = vadd.f32 %v276, %v480
        %v482 = vpop.f32.mrb[0].mxu0
        %v483 = vpop.f32.mrb[0].mxu0
        %v484 = vadd.f32 %v276, %v483
        %v485 = vpop.f32.mrb[0].mxu0
        %486 = vdwg.mxu0
        %v487 = vtanh.pop %v361
        %v488 = vtanh.pop %v364
        %v489 = vtanh.pop %v369
        %v490 = vtanh.pop %v372
        %v491 = vtanh.pop %v377
        %v492 = vtanh.pop %v380
        %v493 = vtanh.pop %v385
        %v494 = vtanh.pop %v388
        %v495 = vtanh.pop %v393
        %v496 = vtanh.pop %v396
        %v497 = vtanh.pop %v401
        %v498 = vtanh.pop %v404
        %v499 = vtanh.pop %v409
        %v500 = vtanh.pop %v412
        %v501 = vtanh.pop %v417
        %v502 = vtanh.pop %v420
        %v503 = vtanh.pop %v425
        %v504 = vtanh.pop %v428
        %v505 = vtanh.pop %v433
        %v506 = vtanh.pop %v436
        %v507 = vtanh.pop %v441
        %v508 = vtanh.pop %v444
        %v509 = vtanh.pop %v449
        %v510 = vtanh.pop %v452
        %v511 = vtanh.pop %v457
        %v512 = vtanh.pop %v460
        %v513 = vtanh.pop %v465
        %v514 = vtanh.pop %v468
        %v515 = vtanh.pop %v473
        %v516 = vtanh.pop %v476
        %v517 = vtanh.pop %v481
        %v518 = vtanh.pop %v484
        %v519 = vadd.f32 %v487, %v488
        %v520 = vrot.slane %v519, 4
        %v521 = vadd.f32 %v519, %v520
        %v522 = vrot.slane %v521, 2
        %v523 = vadd.f32 %v521, %v522
        %v524 = vrot.slane %v523, 1
        %v525 = vadd.f32 %v523, %v524
        %v526 = vadd.f32 %v489, %v490
        %v527 = vrot.slane %v526, 4
        %v528 = vadd.f32 %v526, %v527
        %v529 = vrot.slane %v528, 2
        %v530 = vadd.f32 %v528, %v529
        %v531 = vrot.slane %v530, 1
        %v532 = vadd.f32 %v530, %v531
        %v533 = vadd.f32 %v491, %v492
        %v534 = vrot.slane %v533, 4
        %v535 = vadd.f32 %v533, %v534
        %v536 = vrot.slane %v535, 2
        %v537 = vadd.f32 %v535, %v536
        %v538 = vrot.slane %v537, 1
        %v539 = vadd.f32 %v537, %v538
        %v540 = vadd.f32 %v493, %v494
        %v541 = vrot.slane %v540, 4
        %v542 = vadd.f32 %v540, %v541
        %v543 = vrot.slane %v542, 2
        %v544 = vadd.f32 %v542, %v543
        %v545 = vrot.slane %v544, 1
        %v546 = vadd.f32 %v544, %v545
        %v547 = vadd.f32 %v495, %v496
        %v548 = vrot.slane %v547, 4
        %v549 = vadd.f32 %v547, %v548
        %v550 = vrot.slane %v549, 2
        %v551 = vadd.f32 %v549, %v550
        %v552 = vrot.slane %v551, 1
        %v553 = vadd.f32 %v551, %v552
        %v554 = vadd.f32 %v497, %v498
        %v555 = vrot.slane %v554, 4
        %v556 = vadd.f32 %v554, %v555
        %v557 = vrot.slane %v556, 2
        %v558 = vadd.f32 %v556, %v557
        %v559 = vrot.slane %v558, 1
        %v560 = vadd.f32 %v558, %v559
        %v561 = vadd.f32 %v499, %v500
        %v562 = vrot.slane %v561, 4
        %v563 = vadd.f32 %v561, %v562
        %v564 = vrot.slane %v563, 2
        %v565 = vadd.f32 %v563, %v564
        %v566 = vrot.slane %v565, 1
        %v567 = vadd.f32 %v565, %v566
        %v568 = vadd.f32 %v501, %v502
        %v569 = vrot.slane %v568, 4
        %v570 = vadd.f32 %v568, %v569
        %v571 = vrot.slane %v570, 2
        %v572 = vadd.f32 %v570, %v571
        %v573 = vrot.slane %v572, 1
        %v574 = vadd.f32 %v572, %v573
        %v575 = vadd.f32 %v503, %v504
        %v576 = vrot.slane %v575, 4
        %v577 = vadd.f32 %v575, %v576
        %v578 = vrot.slane %v577, 2
        %v579 = vadd.f32 %v577, %v578
        %v580 = vrot.slane %v579, 1
        %v581 = vadd.f32 %v579, %v580
        %v582 = vadd.f32 %v505, %v506
        %v583 = vrot.slane %v582, 4
        %v584 = vadd.f32 %v582, %v583
        %v585 = vrot.slane %v584, 2
        %v586 = vadd.f32 %v584, %v585
        %v587 = vrot.slane %v586, 1
        %v588 = vadd.f32 %v586, %v587
        %v589 = vadd.f32 %v507, %v508
        %v590 = vrot.slane %v589, 4
        %v591 = vadd.f32 %v589, %v590
        %v592 = vrot.slane %v591, 2
        %v593 = vadd.f32 %v591, %v592
        %v594 = vrot.slane %v593, 1
        %v595 = vadd.f32 %v593, %v594
        %v596 = vadd.f32 %v509, %v510
        %v597 = vrot.slane %v596, 4
        %v598 = vadd.f32 %v596, %v597
        %v599 = vrot.slane %v598, 2
        %v600 = vadd.f32 %v598, %v599
        %v601 = vrot.slane %v600, 1
        %v602 = vadd.f32 %v600, %v601
        %v603 = vadd.f32 %v511, %v512
        %v604 = vrot.slane %v603, 4
        %v605 = vadd.f32 %v603, %v604
        %v606 = vrot.slane %v605, 2
        %v607 = vadd.f32 %v605, %v606
        %v608 = vrot.slane %v607, 1
        %v609 = vadd.f32 %v607, %v608
        %v610 = vadd.f32 %v513, %v514
        %v611 = vrot.slane %v610, 4
        %v612 = vadd.f32 %v610, %v611
        %v613 = vrot.slane %v612, 2
        %v614 = vadd.f32 %v612, %v613
        %v615 = vrot.slane %v614, 1
        %v616 = vadd.f32 %v614, %v615
        %v617 = vadd.f32 %v515, %v516
        %v618 = vrot.slane %v617, 4
        %v619 = vadd.f32 %v617, %v618
        %v620 = vrot.slane %v619, 2
        %v621 = vadd.f32 %v619, %v620
        %v622 = vrot.slane %v621, 1
        %v623 = vadd.f32 %v621, %v622
        %v624 = vadd.f32 %v517, %v518
        %v625 = vrot.slane %v624, 4
        %v626 = vadd.f32 %v624, %v625
        %v627 = vrot.slane %v626, 2
        %v628 = vadd.f32 %v626, %v627
        %v629 = vrot.slane %v628, 1
        %v630 = vadd.f32 %v628, %v629
        %v631 = vmul.f32 %v525, 0.0625
        %v632 = vmul.f32 %v532, 0.0625
        %v633 = vmul.f32 %v539, 0.0625
        %v634 = vmul.f32 %v546, 0.0625
        %v635 = vmul.f32 %v553, 0.0625
        %v636 = vmul.f32 %v560, 0.0625
        %v637 = vmul.f32 %v567, 0.0625
        %v638 = vmul.f32 %v574, 0.0625
        %v639 = vmul.f32 %v581, 0.0625
        %v640 = vmul.f32 %v588, 0.0625
        %v641 = vmul.f32 %v595, 0.0625
        %v642 = vmul.f32 %v602, 0.0625
        %v643 = vmul.f32 %v609, 0.0625
        %v644 = vmul.f32 %v616, 0.0625
        %v645 = vmul.f32 %v623, 0.0625
        %v646 = vmul.f32 %v630, 0.0625
        %v647 = vsub.f32 %v487, %v631
        %v648 = vsub.f32 %v488, %v631
        %v649 = vsub.f32 %v489, %v632
        %v650 = vsub.f32 %v490, %v632
        %v651 = vsub.f32 %v491, %v633
        %v652 = vsub.f32 %v492, %v633
        %v653 = vsub.f32 %v493, %v634
        %v654 = vsub.f32 %v494, %v634
        %v655 = vsub.f32 %v495, %v635
        %v656 = vsub.f32 %v496, %v635
        %v657 = vsub.f32 %v497, %v636
        %v658 = vsub.f32 %v498, %v636
        %v659 = vsub.f32 %v499, %v637
        %v660 = vsub.f32 %v500, %v637
        %v661 = vsub.f32 %v501, %v638
        %v662 = vsub.f32 %v502, %v638
        %v663 = vsub.f32 %v503, %v639
        %v664 = vsub.f32 %v504, %v639
        %v665 = vsub.f32 %v505, %v640
        %v666 = vsub.f32 %v506, %v640
        %v667 = vsub.f32 %v507, %v641
        %v668 = vsub.f32 %v508, %v641
        %v669 = vsub.f32 %v509, %v642
        %v670 = vsub.f32 %v510, %v642
        %v671 = vsub.f32 %v511, %v643
        %v672 = vsub.f32 %v512, %v643
        %v673 = vsub.f32 %v513, %v644
        %v674 = vsub.f32 %v514, %v644
        %v675 = vsub.f32 %v515, %v645
        %v676 = vsub.f32 %v516, %v645
        %v677 = vsub.f32 %v517, %v646
        %v678 = vsub.f32 %v518, %v646
        %v679 = vmul.f32 %v647, %v647
        %v680 = vmul.f32 %v648, %v648
        %v681 = vmul.f32 %v649, %v649
        %v682 = vmul.f32 %v650, %v650
        %v683 = vmul.f32 %v651, %v651
        %v684 = vmul.f32 %v652, %v652
        %v685 = vmul.f32 %v653, %v653
        %v686 = vmul.f32 %v654, %v654
        %v687 = vmul.f32 %v655, %v655
        %v688 = vmul.f32 %v656, %v656
        %v689 = vmul.f32 %v657, %v657
        %v690 = vmul.f32 %v658, %v658
        %v691 = vmul.f32 %v659, %v659
        %v692 = vmul.f32 %v660, %v660
        %v693 = vmul.f32 %v661, %v661
        %v694 = vmul.f32 %v662, %v662
        %v695 = vmul.f32 %v663, %v663
        %v696 = vmul.f32 %v664, %v664
        %v697 = vmul.f32 %v665, %v665
        %v698 = vmul.f32 %v666, %v666
        %v699 = vmul.f32 %v667, %v667
        %v700 = vmul.f32 %v668, %v668
        %v701 = vmul.f32 %v669, %v669
        %v702 = vmul.f32 %v670, %v670
        %v703 = vmul.f32 %v671, %v671
        %v704 = vmul.f32 %v672, %v672
        %v705 = vmul.f32 %v673, %v673
        %v706 = vmul.f32 %v674, %v674
        %v707 = vmul.f32 %v675, %v675
        %v708 = vmul.f32 %v676, %v676
        %v709 = vmul.f32 %v677, %v677
        %v710 = vmul.f32 %v678, %v678
        %v711 = vadd.f32 %v679, %v680
        %v712 = vrot.slane %v711, 4
        %v713 = vadd.f32 %v711, %v712
        %v714 = vrot.slane %v713, 2
        %v715 = vadd.f32 %v713, %v714
        %v716 = vrot.slane %v715, 1
        %v717 = vadd.f32 %v715, %v716
        %v718 = vadd.f32 %v681, %v682
        %v719 = vrot.slane %v718, 4
        %v720 = vadd.f32 %v718, %v719
        %v721 = vrot.slane %v720, 2
        %v722 = vadd.f32 %v720, %v721
        %v723 = vrot.slane %v722, 1
        %v724 = vadd.f32 %v722, %v723
        %v725 = vadd.f32 %v683, %v684
        %v726 = vrot.slane %v725, 4
        %v727 = vadd.f32 %v725, %v726
        %v728 = vrot.slane %v727, 2
        %v729 = vadd.f32 %v727, %v728
        %v730 = vrot.slane %v729, 1
        %v731 = vadd.f32 %v729, %v730
        %v732 = vadd.f32 %v685, %v686
        %v733 = vrot.slane %v732, 4
        %v734 = vadd.f32 %v732, %v733
        %v735 = vrot.slane %v734, 2
        %v736 = vadd.f32 %v734, %v735
        %v737 = vrot.slane %v736, 1
        %v738 = vadd.f32 %v736, %v737
        %v739 = vadd.f32 %v687, %v688
        %v740 = vrot.slane %v739, 4
        %v741 = vadd.f32 %v739, %v740
        %v742 = vrot.slane %v741, 2
        %v743 = vadd.f32 %v741, %v742
        %v744 = vrot.slane %v743, 1
        %v745 = vadd.f32 %v743, %v744
        %v746 = vadd.f32 %v689, %v690
        %v747 = vrot.slane %v746, 4
        %v748 = vadd.f32 %v746, %v747
        %v749 = vrot.slane %v748, 2
        %v750 = vadd.f32 %v748, %v749
        %v751 = vrot.slane %v750, 1
        %v752 = vadd.f32 %v750, %v751
        %v753 = vadd.f32 %v691, %v692
        %v754 = vrot.slane %v753, 4
        %v755 = vadd.f32 %v753, %v754
        %v756 = vrot.slane %v755, 2
        %v757 = vadd.f32 %v755, %v756
        %v758 = vrot.slane %v757, 1
        %v759 = vadd.f32 %v757, %v758
        %v760 = vadd.f32 %v693, %v694
        %v761 = vrot.slane %v760, 4
        %v762 = vadd.f32 %v760, %v761
        %v763 = vrot.slane %v762, 2
        %v764 = vadd.f32 %v762, %v763
        %v765 = vrot.slane %v764, 1
        %v766 = vadd.f32 %v764, %v765
        %v767 = vadd.f32 %v695, %v696
        %v768 = vrot.slane %v767, 4
        %v769 = vadd.f32 %v767, %v768
        %v770 = vrot.slane %v769, 2
        %v771 = vadd.f32 %v769, %v770
        %v772 = vrot.slane %v771, 1
        %v773 = vadd.f32 %v771, %v772
        %v774 = vadd.f32 %v697, %v698
        %v775 = vrot.slane %v774, 4
        %v776 = vadd.f32 %v774, %v775
        %v777 = vrot.slane %v776, 2
        %v778 = vadd.f32 %v776, %v777
        %v779 = vrot.slane %v778, 1
        %v780 = vadd.f32 %v778, %v779
        %v781 = vadd.f32 %v699, %v700
        %v782 = vrot.slane %v781, 4
        %v783 = vadd.f32 %v781, %v782
        %v784 = vrot.slane %v783, 2
        %v785 = vadd.f32 %v783, %v784
        %v786 = vrot.slane %v785, 1
        %v787 = vadd.f32 %v785, %v786
        %v788 = vadd.f32 %v701, %v702
        %v789 = vrot.slane %v788, 4
        %v790 = vadd.f32 %v788, %v789
        %v791 = vrot.slane %v790, 2
        %v792 = vadd.f32 %v790, %v791
        %v793 = vrot.slane %v792, 1
        %v794 = vadd.f32 %v792, %v793
        %v795 = vadd.f32 %v703, %v704
        %v796 = vrot.slane %v795, 4
        %v797 = vadd.f32 %v795, %v796
        %v798 = vrot.slane %v797, 2
        %v799 = vadd.f32 %v797, %v798
        %v800 = vrot.slane %v799, 1
        %v801 = vadd.f32 %v799, %v800
        %v802 = vadd.f32 %v705, %v706
        %v803 = vrot.slane %v802, 4
        %v804 = vadd.f32 %v802, %v803
        %v805 = vrot.slane %v804, 2
        %v806 = vadd.f32 %v804, %v805
        %v807 = vrot.slane %v806, 1
        %v808 = vadd.f32 %v806, %v807
        %v809 = vadd.f32 %v707, %v708
        %v810 = vrot.slane %v809, 4
        %v811 = vadd.f32 %v809, %v810
        %v812 = vrot.slane %v811, 2
        %v813 = vadd.f32 %v811, %v812
        %v814 = vrot.slane %v813, 1
        %v815 = vadd.f32 %v813, %v814
        %v816 = vadd.f32 %v709, %v710
        %v817 = vrot.slane %v816, 4
        %v818 = vadd.f32 %v816, %v817
        %v819 = vrot.slane %v818, 2
        %v820 = vadd.f32 %v818, %v819
        %v821 = vrot.slane %v820, 1
        %v822 = vadd.f32 %v820, %v821
        %v823 = vmul.f32 %v717, 0.06666667
        %v824 = vmul.f32 %v724, 0.06666667
        %v825 = vmul.f32 %v731, 0.06666667
        %v826 = vmul.f32 %v738, 0.06666667
        %v827 = vmul.f32 %v745, 0.06666667
        %v828 = vmul.f32 %v752, 0.06666667
        %v829 = vmul.f32 %v759, 0.06666667
        %v830 = vmul.f32 %v766, 0.06666667
        %v831 = vmul.f32 %v773, 0.06666667
        %v832 = vmul.f32 %v780, 0.06666667
        %v833 = vmul.f32 %v787, 0.06666667
        %v834 = vmul.f32 %v794, 0.06666667
        %v835 = vmul.f32 %v801, 0.06666667
        %v836 = vmul.f32 %v808, 0.06666667
        %v837 = vmul.f32 %v815, 0.06666667
        %v838 = vmul.f32 %v822, 0.06666667
        %v839 = vrsqrt.pop %v823
        %v840 = vmul.f32 %v823, %v839
        %vm841 = vcmp.eq.f32.partialorder %v823, inf
        %v842 = vsel %vm841, %v823, %v840
        %vm843 = vcmp.eq.f32.partialorder %v823, 0.0
        %v844 = vand.u32 %v823, 2147483648
        %v845 = vsel %vm843, %v844, %v842
        %v846 = vrsqrt.pop %v824
        %v847 = vmul.f32 %v824, %v846
        %vm848 = vcmp.eq.f32.partialorder %v824, inf
        %v849 = vsel %vm848, %v824, %v847
        %vm850 = vcmp.eq.f32.partialorder %v824, 0.0
        %v851 = vand.u32 %v824, 2147483648
        %v852 = vsel %vm850, %v851, %v849
        %v853 = vrsqrt.pop %v825
        %v854 = vmul.f32 %v825, %v853
        %vm855 = vcmp.eq.f32.partialorder %v825, inf
        %v856 = vsel %vm855, %v825, %v854
        %vm857 = vcmp.eq.f32.partialorder %v825, 0.0
        %v858 = vand.u32 %v825, 2147483648
        %v859 = vsel %vm857, %v858, %v856
        %v860 = vrsqrt.pop %v826
        %v861 = vmul.f32 %v826, %v860
        %vm862 = vcmp.eq.f32.partialorder %v826, inf
        %v863 = vsel %vm862, %v826, %v861
        %vm864 = vcmp.eq.f32.partialorder %v826, 0.0
        %v865 = vand.u32 %v826, 2147483648
        %v866 = vsel %vm864, %v865, %v863
        %v867 = vrsqrt.pop %v827
        %v868 = vmul.f32 %v827, %v867
        %vm869 = vcmp.eq.f32.partialorder %v827, inf
        %v870 = vsel %vm869, %v827, %v868
        %vm871 = vcmp.eq.f32.partialorder %v827, 0.0
        %v872 = vand.u32 %v827, 2147483648
        %v873 = vsel %vm871, %v872, %v870
        %v874 = vrsqrt.pop %v828
        %v875 = vmul.f32 %v828, %v874
        %vm876 = vcmp.eq.f32.partialorder %v828, inf
        %v877 = vsel %vm876, %v828, %v875
        %vm878 = vcmp.eq.f32.partialorder %v828, 0.0
        %v879 = vand.u32 %v828, 2147483648
        %v880 = vsel %vm878, %v879, %v877
        %v881 = vrsqrt.pop %v829
        %v882 = vmul.f32 %v829, %v881
        %vm883 = vcmp.eq.f32.partialorder %v829, inf
        %v884 = vsel %vm883, %v829, %v882
        %vm885 = vcmp.eq.f32.partialorder %v829, 0.0
        %v886 = vand.u32 %v829, 2147483648
        %v887 = vsel %vm885, %v886, %v884
        %v888 = vrsqrt.pop %v830
        %v889 = vmul.f32 %v830, %v888
        %vm890 = vcmp.eq.f32.partialorder %v830, inf
        %v891 = vsel %vm890, %v830, %v889
        %vm892 = vcmp.eq.f32.partialorder %v830, 0.0
        %v893 = vand.u32 %v830, 2147483648
        %v894 = vsel %vm892, %v893, %v891
        %v895 = vrsqrt.pop %v831
        %v896 = vmul.f32 %v831, %v895
        %vm897 = vcmp.eq.f32.partialorder %v831, inf
        %v898 = vsel %vm897, %v831, %v896
        %vm899 = vcmp.eq.f32.partialorder %v831, 0.0
        %v900 = vand.u32 %v831, 2147483648
        %v901 = vsel %vm899, %v900, %v898
        %v902 = vrsqrt.pop %v832
        %v903 = vmul.f32 %v832, %v902
        %vm904 = vcmp.eq.f32.partialorder %v832, inf
        %v905 = vsel %vm904, %v832, %v903
        %vm906 = vcmp.eq.f32.partialorder %v832, 0.0
        %v907 = vand.u32 %v832, 2147483648
        %v908 = vsel %vm906, %v907, %v905
        %v909 = vrsqrt.pop %v833
        %v910 = vmul.f32 %v833, %v909
        %vm911 = vcmp.eq.f32.partialorder %v833, inf
        %v912 = vsel %vm911, %v833, %v910
        %vm913 = vcmp.eq.f32.partialorder %v833, 0.0
        %v914 = vand.u32 %v833, 2147483648
        %v915 = vsel %vm913, %v914, %v912
        %v916 = vrsqrt.pop %v834
        %v917 = vmul.f32 %v834, %v916
        %vm918 = vcmp.eq.f32.partialorder %v834, inf
        %v919 = vsel %vm918, %v834, %v917
        %vm920 = vcmp.eq.f32.partialorder %v834, 0.0
        %v921 = vand.u32 %v834, 2147483648
        %v922 = vsel %vm920, %v921, %v919
        %v923 = vrsqrt.pop %v835
        %v924 = vmul.f32 %v835, %v923
        %vm925 = vcmp.eq.f32.partialorder %v835, inf
        %v926 = vsel %vm925, %v835, %v924
        %vm927 = vcmp.eq.f32.partialorder %v835, 0.0
        %v928 = vand.u32 %v835, 2147483648
        %v929 = vsel %vm927, %v928, %v926
        %v930 = vrsqrt.pop %v836
        %v931 = vmul.f32 %v836, %v930
        %vm932 = vcmp.eq.f32.partialorder %v836, inf
        %v933 = vsel %vm932, %v836, %v931
        %vm934 = vcmp.eq.f32.partialorder %v836, 0.0
        %v935 = vand.u32 %v836, 2147483648
        %v936 = vsel %vm934, %v935, %v933
        %v937 = vrsqrt.pop %v837
        %v938 = vmul.f32 %v837, %v937
        %vm939 = vcmp.eq.f32.partialorder %v837, inf
        %v940 = vsel %vm939, %v837, %v938
        %vm941 = vcmp.eq.f32.partialorder %v837, 0.0
        %v942 = vand.u32 %v837, 2147483648
        %v943 = vsel %vm941, %v942, %v940
        %v944 = vrsqrt.pop %v838
        %v945 = vmul.f32 %v838, %v944
        %vm946 = vcmp.eq.f32.partialorder %v838, inf
        %v947 = vsel %vm946, %v838, %v945
        %vm948 = vcmp.eq.f32.partialorder %v838, 0.0
        %v949 = vand.u32 %v838, 2147483648
        %v950 = vsel %vm948, %v949, %v947
        %vm967 = vcmask 1041409
        %v968 = vsel %vm967, %v632, %v631
        %vm969 = vcmask 1042434
        %v970 = vsel %vm969, %v633, %v968
        %vm971 = vcmask 1043459
        %v972 = vsel %vm971, %v634, %v970
        %vm973 = vcmask 1044484
        %v974 = vsel %vm973, %v635, %v972
        %vm975 = vcmask 1045509
        %v976 = vsel %vm975, %v636, %v974
        %vm977 = vcmask 1046534
        %v978 = vsel %vm977, %v637, %v976
        %vm979 = vcmask 1047559
        %v980 = vsel %vm979, %v638, %v978
        %v981 = vsel %vm967, %v640, %v639
        %v982 = vsel %vm969, %v641, %v981
        %v983 = vsel %vm971, %v642, %v982
        %v984 = vsel %vm973, %v643, %v983
        %v985 = vsel %vm975, %v644, %v984
        %v986 = vsel %vm977, %v645, %v985
        %v987 = vsel %vm979, %v646, %v986
        %990 = vst [vmem:[%s203] sm:$0xff] %v980
        %991 = vst [vmem:[%s203 + $0x10] sm:$0xff] %v987
        %v1008 = vsel %vm967, %v852, %v845
        %v1009 = vsel %vm969, %v859, %v1008
        %v1010 = vsel %vm971, %v866, %v1009
        %v1011 = vsel %vm973, %v873, %v1010
        %v1012 = vsel %vm975, %v880, %v1011
        %v1013 = vsel %vm977, %v887, %v1012
        %v1014 = vsel %vm979, %v894, %v1013
        %v1015 = vsel %vm967, %v908, %v901
        %v1016 = vsel %vm969, %v915, %v1015
        %v1017 = vsel %vm971, %v922, %v1016
        %v1018 = vsel %vm973, %v929, %v1017
        %v1019 = vsel %vm975, %v936, %v1018
        %v1020 = vsel %vm977, %v943, %v1019
        %v1021 = vsel %vm979, %v950, %v1020
        %1024 = vst [vmem:[%s203 + $0x8] sm:$0xff] %v1014
        %1025 = vst [vmem:[%s203 + $0x18] sm:$0xff] %v1021
        %s1026 = sand.u32 %s97, 1
        %s1027 = scalar_lea.sflag [#allocation4], %s1026
        %s1028 = sand.u32 %s97, 1
        %s1029 = smul.addr %s1028, 32
        %s1030 = scalar_lea.vmem [#allocation7], %s1029
        // Predicated region
        $region41: #{tpu_custom_call.1} parent=31 // pred_check
          %p1031 = pneg %p107
        $region42: #{tpu_custom_call.1} parent=31 // pred_check_branch
          %1033 = sbr.rel (%p1031) target = $region44
        $region43: #{tpu_custom_call.1} parent=31 // pred_region
          %s1034 = smul.u32 2, %s21
          %s1036 = ssub.s32 512, 512
          %1037 = vsyncadd %s1027, %s1036
          %s1038 = smul.addr %s1034, 2
          %s1039 = smul.addr %s1038, 128
          %s1040 = scalar_lea.hbm %s3, %s1039
          %s1041 = sshll.u32 %s1030, 4
          %s1042 = int_to_ptr.vmem [resolvable:$true] %s1041
          %1047 = dma.vmem_to_hbm [thread:$0]  %s1042, 512, %s1040, %s1027, 256, 256, 16
        $region44: #{tpu_custom_call.1} parent=31 // pred_fallthru
          _
      $region32: #{tpu_custom_call.1} parent=5 // pred_fallthru
        _
      %p1048 = scmp.le.s32.totalorder 2, %s16
      // Predicated region
      $region45: #{tpu_custom_call.1} parent=5 // pred_check
        %p1049 = pneg %p1048
      $region46: #{tpu_custom_call.1} parent=5 // pred_check_branch
        %1051 = sbr.rel (%p1049) target = $region48
      $region47: #{tpu_custom_call.1} parent=5 // pred_region
        %s1052 = ssub.s32 %s16, 2
        // Predicated region
        $region49: #{tpu_custom_call.1} parent=47 // pred_check
          %p1053 = pneg %p113
        $region50: #{tpu_custom_call.1} parent=47 // pred_check_branch
          %1055 = sbr.rel (%p1053) target = $region52
        $region51: #{tpu_custom_call.1} parent=47 // pred_region
          %s1056 = sand.u32 %s98, 1
          %s1057 = scalar_lea.sflag [#allocation4], %s1056
          %s1058 = sand.u32 %s98, 1
          %s1059 = smul.addr %s1058, 32
          %s1060 = scalar_lea.vmem [#allocation7], %s1059
          %1061 = dma.done %s1057, 512
        $region52: #{tpu_custom_call.1} parent=47 // pred_fallthru
          _
      $region48: #{tpu_custom_call.1} parent=5 // pred_fallthru
        _
    $region6: #{tpu_custom_call.1} parent=1 // loop_footer
      %s20 = sadd.s32 1, %s16
    $region7: #{tpu_custom_call.1} parent=1 // loop_footer_branch
      %15 = sbr.rel target = $region3
    $region8: #{tpu_custom_call.1} parent=1 // loop_exit
      _
    %1062 = vsyncpa [#allocation3], 1
    %s1063 = scalar_lea.sflag [#allocation3], 1
    %1064 = vsyncpa %s1063, 1
    %1065 = vsyncpa [#allocation6], 1
    %1066 = vsyncpa [#allocation4], 1
    %s1067 = scalar_lea.sflag [#allocation4], 1
    %1068 = vsyncpa %s1067, 1

</llo_original>
